<compile_context>
chip_gen: v7x
topology: tpu7x:2x2x1
jax: 0.10.0
libtpu: 0.0.40
codegen_flags: <defaults>
</compile_context>

<pallas_src>
import functools

import jax
import jax.numpy as jnp
from jax import lax
from jax.experimental import pallas as pl
from jax.experimental.pallas import tpu as pltpu

# Layer sizes exactly as the PyTorch module's __init__ computes them
# (pinned as literals; round(57.5) == 58 via banker's rounding).
D_IN = 115
D1 = 86    # round(115 * 0.75)
D2 = 58    # round(115 * 0.5)
D3 = 38    # round(115 * 0.33)
D4 = 29    # round(115 * 0.25)

# Weight / bias element counts (for the cost estimate).
_W_ELEMS = D_IN * D1 + D1 * D2 + D2 * D3 + D3 * (2 * D4)   # 19286
_B_ELEMS = D1 + D2 + D3 + 2 * D4                           # 240


def _round_up(n, m):
    return (n + m - 1) // m * m


def _encoder_kernel(x_ref, noise_ref,
                    w1_ref, b1_ref,
                    w2_ref, b2_ref,
                    w3_ref, b3_ref,
                    w45_ref, b45_ref,
                    z_ref, kl_ref,
                    *, batch, block_rows):
    x = x_ref[...]

    # x = relu(linear1(x)); x = relu(linear2(x)); x = relu(linear3(x))
    h = jnp.dot(x, w1_ref[...], preferred_element_type=jnp.float32) + b1_ref[...]
    h = jnp.maximum(h, 0.0)
    h = jnp.dot(h, w2_ref[...], preferred_element_type=jnp.float32) + b2_ref[...]
    h = jnp.maximum(h, 0.0)
    h = jnp.dot(h, w3_ref[...], preferred_element_type=jnp.float32) + b3_ref[...]
    h = jnp.maximum(h, 0.0)

    # Fused mu/sigma head: single MXU push, then split lanes (XLU, idle slot).
    s45 = jnp.dot(h, w45_ref[...], preferred_element_type=jnp.float32) + b45_ref[...]
    mu = s45[:, :D4]
    s = s45[:, D4:]          # pre-exp logits; log(sigma) == s exactly
    sigma = jnp.exp(s)

    # z = mu + sigma * N(0,1)  (noise supplied from outside for determinism).
    # Out-of-bounds rows of a ragged boundary block compute garbage here but
    # are clipped on writeback by Pallas.
    z_ref[...] = mu + sigma * noise_ref[...]

    # kl term per element: sigma^2 + mu^2 - log(sigma) - 1/2, with log(sigma)=s.
    term = sigma * sigma + mu * mu - s - 0.5

    if batch % block_rows != 0:
        # Mask rows beyond the true batch (ragged boundary block) so undefined
        # input rows don't pollute the KL sum. jnp.where is select-based, so
        # Inf/NaN from garbage rows cannot propagate.
        row0 = pl.program_id(0) * block_rows
        rows = row0 + lax.broadcasted_iota(jnp.int32, (block_rows, 1), 0)
        term = jnp.where(rows < batch, term, 0.0)

    partial = jnp.sum(term)
    # Per-block partial, broadcast over one lane-dense (8,128) tile
    # (unmasked vst); wrapper sums kl_parts[:, 0, 0].
    kl_ref[...] = jnp.broadcast_to(partial, kl_ref.shape)


def vae_encoder_forward(x, params, noise, *, block_rows=1024,
                        vmem_limit_bytes=None):
    """Runs the VariationalEncoder forward pass.

    x:      (B, 115) float32
    params: dict of transposed weights (in,out) and biases (1,out), keys w1..w5/b1..b5
    noise:  (B, 29) float32 standard-normal sample
    returns (z, kl) with z: (B, 29), kl: scalar

    block_rows: max batch-tile rows (multiple of 8). Default 1024 fits every
      chip's default scoped VMEM; set vmem_limit_bytes if you go much larger
      on v5e (16 MiB scoped default).
    """
    B = x.shape[0]

    # Fuse the two output heads (linear4 | linear5) once in the wrapper.
    w45 = jnp.concatenate([params["w4"], params["w5"]], axis=1)   # (38, 58)
    b45 = jnp.concatenate([params["b4"], params["b5"]], axis=1)   # (1, 58)

    # Batch tiling: rows per block (multiple of 8). Cap at ~half the batch so
    # the parallel grid has >= 2 blocks and both v7x TensorCores get work; an
    # extra grid step on single-core chips costs only ~0.35 us.
    half = _round_up(max(pl.cdiv(B, 2), 1), 8)
    tb = max(8, min(_round_up(block_rows, 8), half))
    grid = pl.cdiv(B, tb)

    # No padding: the boundary block (if B % tb != 0) is ragged. z writebacks
    # are clipped by Pallas; the KL mask inside the kernel handles the rest.

    def const_spec(shape):
        # Weights/biases: constant block index -> DMA'd once, VMEM-resident.
        return pl.BlockSpec(shape, lambda i: (0,) * len(shape))

    kernel = functools.partial(_encoder_kernel, batch=B, block_rows=tb)

    # Advisory cost estimate so XLA schedules the surrounding small ops well.
    cost = pl.CostEstimate(
        flops=2 * B * _W_ELEMS,
        transcendentals=B * D4,
        bytes_accessed=(B * (D_IN + D4 + D4) * 4
                        + (_W_ELEMS + _B_ELEMS) * 4
                        + grid * 8 * 128 * 4),
    )

    z, kl_parts = pl.pallas_call(
        kernel,
        out_shape=(
            jax.ShapeDtypeStruct((B, D4), jnp.float32),
            jax.ShapeDtypeStruct((grid, 8, 128), jnp.float32),
        ),
        grid=(grid,),
        in_specs=[
            pl.BlockSpec((tb, D_IN), lambda i: (i, 0)),   # x rows
            pl.BlockSpec((tb, D4), lambda i: (i, 0)),     # noise rows
            const_spec((D_IN, D1)), const_spec((1, D1)),
            const_spec((D1, D2)), const_spec((1, D2)),
            const_spec((D2, D3)), const_spec((1, D3)),
            const_spec((D3, 2 * D4)), const_spec((1, 2 * D4)),
        ],
        out_specs=(
            pl.BlockSpec((tb, D4), lambda i: (i, 0)),
            pl.BlockSpec((1, 8, 128), lambda i: (i, 0, 0)),
        ),
        compiler_params=pltpu.CompilerParams(
            dimension_semantics=("parallel",),
            vmem_limit_bytes=vmem_limit_bytes),
        cost_estimate=cost,
    )(x, noise,
      params["w1"], params["b1"],
      params["w2"], params["b2"],
      params["w3"], params["b3"],
      w45, b45)

    kl = jnp.sum(kl_parts[:, 0, 0])
    return z, kl
    # TODO(synk): if the surrounding model can hand over / accept a
    # batch-on-lanes layout (x as (115, B), z as (29, B)), switch to it for
    # lane-dense (unmasked) stores; all feature dims here are < 128 lanes.


def init_params(key):
    """Deterministic parameter init mirroring nn.Linear's U(-1/sqrt(in), 1/sqrt(in))."""
    dims = [(D_IN, D1), (D1, D2), (D2, D3), (D3, D4), (D3, D4)]
    params = {}
    for i, (din, dout) in enumerate(dims, start=1):
        key, kw, kb = jax.random.split(key, 3)
        bound = 1.0 / jnp.sqrt(jnp.float32(din))
        # stored already transposed: (in, out)
        params[f"w{i}"] = jax.random.uniform(
            kw, (din, dout), jnp.float32, minval=-bound, maxval=bound)
        params[f"b{i}"] = jax.random.uniform(
            kb, (1, dout), jnp.float32, minval=-bound, maxval=bound)
    return params


def _reference(x, params, noise):
    h = jnp.maximum(x @ params["w1"] + params["b1"], 0.0)
    h = jnp.maximum(h @ params["w2"] + params["b2"], 0.0)
    h = jnp.maximum(h @ params["w3"] + params["b3"], 0.0)
    mu = h @ params["w4"] + params["b4"]
    s = h @ params["w5"] + params["b5"]
    sigma = jnp.exp(s)
    z = mu + sigma * noise
    kl = jnp.sum(sigma ** 2 + mu ** 2 - jnp.log(sigma) - 0.5)
    return z, kl


if __name__ == "__main__":
    key = jax.random.PRNGKey(0)
    k_params, k_x, k_noise, k_x2, k_n2 = jax.random.split(key, 5)

    params = init_params(k_params)

    # Small case (single block).
    B = 8
    x = jax.random.normal(k_x, (B, D_IN), dtype=jnp.float32)
    noise = jax.random.normal(k_noise, (B, D4), dtype=jnp.float32)
    z, kl = vae_encoder_forward(x, params, noise)
    jax.block_until_ready((z, kl))

    z_ref, kl_ref = _reference(x, params, noise)
    assert z.shape == (B, D4)
    assert jnp.allclose(z, z_ref, atol=2e-4, rtol=2e-4)
    assert jnp.allclose(kl, kl_ref, atol=1e-2, rtol=5e-4)

    # Larger, non-multiple batch with a small tile: exercises the multi-block
    # grid, the ragged (unpadded) boundary block, the KL row mask and the
    # per-block KL partials (parallel grid on v7x).
    B2 = 300
    x2 = jax.random.normal(k_x2, (B2, D_IN), dtype=jnp.float32)
    noise2 = jax.random.normal(k_n2, (B2, D4), dtype=jnp.float32)
    z2, kl2 = vae_encoder_forward(x2, params, noise2, block_rows=128)
    jax.block_until_ready((z2, kl2))

    z2_ref, kl2_ref = _reference(x2, params, noise2)
    assert z2.shape == (B2, D4)
    assert jnp.allclose(z2, z2_ref, atol=2e-4, rtol=2e-4)
    assert jnp.allclose(kl2, kl2_ref, atol=5e-2, rtol=5e-4)

    # Same batch with the default (large) tile: exercises the two-block
    # "half-batch" split (tb = round_up(cdiv(300, 2), 8) = 152, grid = 2).
    z3, kl3 = vae_encoder_forward(x2, params, noise2)
    jax.block_until_ready((z3, kl3))
    assert jnp.allclose(z3, z2_ref, atol=2e-4, rtol=2e-4)
    assert jnp.allclose(kl3, kl2_ref, atol=5e-2, rtol=5e-4)

    print("KERNEL_OK")
</pallas_src>

<mosaic_0001>
module attributes {stable_mosaic.version = 11 : i64} {
  func.func @_encoder_kernel(%arg0: i32, %arg1: memref<8x115xf32, #tpu.memory_space<vmem>>, %arg2: memref<8x29xf32, #tpu.memory_space<vmem>>, %arg3: memref<115x86xf32, #tpu.memory_space<vmem>>, %arg4: memref<1x86xf32, #tpu.memory_space<vmem>>, %arg5: memref<86x58xf32, #tpu.memory_space<vmem>>, %arg6: memref<1x58xf32, #tpu.memory_space<vmem>>, %arg7: memref<58x38xf32, #tpu.memory_space<vmem>>, %arg8: memref<1x38xf32, #tpu.memory_space<vmem>>, %arg9: memref<38x58xf32, #tpu.memory_space<vmem>>, %arg10: memref<1x58xf32, #tpu.memory_space<vmem>>, %arg11: memref<8x29xf32, #tpu.memory_space<vmem>>, %arg12: memref<1x8x128xf32, #tpu.memory_space<vmem>>) attributes {dimension_semantics = [#tpu.dimension_semantics<parallel>], iteration_bounds = array<i64: 1>, scalar_prefetch = 0 : i64, scratch_operands = 0 : i64, tpu.core_type = #tpu.core_type<tc>, window_params = [{transform_indices = @transform_0, window_bounds = array<i64: 8, 115>}, {transform_indices = @transform_1, window_bounds = array<i64: 8, 29>}, {pipeline_mode = #tpu.pipeline_mode<synchronous>, transform_indices = @transform_2, window_bounds = array<i64: 115, 86>}, {pipeline_mode = #tpu.pipeline_mode<synchronous>, transform_indices = @transform_3, window_bounds = array<i64: 1, 86>}, {pipeline_mode = #tpu.pipeline_mode<synchronous>, transform_indices = @transform_4, window_bounds = array<i64: 86, 58>}, {pipeline_mode = #tpu.pipeline_mode<synchronous>, transform_indices = @transform_5, window_bounds = array<i64: 1, 58>}, {pipeline_mode = #tpu.pipeline_mode<synchronous>, transform_indices = @transform_6, window_bounds = array<i64: 58, 38>}, {pipeline_mode = #tpu.pipeline_mode<synchronous>, transform_indices = @transform_7, window_bounds = array<i64: 1, 38>}, {pipeline_mode = #tpu.pipeline_mode<synchronous>, transform_indices = @transform_8, window_bounds = array<i64: 38, 58>}, {pipeline_mode = #tpu.pipeline_mode<synchronous>, transform_indices = @transform_9, window_bounds = array<i64: 1, 58>}, {transform_indices = @transform_10, window_bounds = array<i64: 8, 29>}, {transform_indices = @transform_11, window_bounds = array<i64: 1, 8, 128>}]} {
    %c0 = arith.constant 0 : index
    %c0_0 = arith.constant 0 : index
    %0 = vector.load %arg1[%c0, %c0_0] : memref<8x115xf32, #tpu.memory_space<vmem>>, vector<8x115xf32>
    %c0_1 = arith.constant 0 : index
    %c0_2 = arith.constant 0 : index
    %1 = vector.load %arg3[%c0_1, %c0_2] : memref<115x86xf32, #tpu.memory_space<vmem>>, vector<115x86xf32>
    %cst = arith.constant dense<0.000000e+00> : vector<8x86xf32>
    %2 = tpu.matmul %0, %1, %cst {dimension_numbers = #tpu.dot_dimension_numbers<[1], [0], [0], [1], [0, 0, 1, 1], [], []>} : vector<8x115xf32>, vector<115x86xf32>, vector<8x86xf32> -> vector<8x86xf32>
    %c0_3 = arith.constant 0 : index
    %c0_4 = arith.constant 0 : index
    %3 = vector.load %arg4[%c0_3, %c0_4] : memref<1x86xf32, #tpu.memory_space<vmem>>, vector<1x86xf32>
    %4 = vector.broadcast %3 : vector<1x86xf32> to vector<8x86xf32>
    %5 = arith.addf %2, %4 : vector<8x86xf32>
    %cst_5 = arith.constant 0.000000e+00 : f32
    %6 = vector.broadcast %cst_5 : f32 to vector<8x86xf32>
    %7 = arith.maximumf %5, %6 : vector<8x86xf32>
    %c0_6 = arith.constant 0 : index
    %c0_7 = arith.constant 0 : index
    %8 = vector.load %arg5[%c0_6, %c0_7] : memref<86x58xf32, #tpu.memory_space<vmem>>, vector<86x58xf32>
    %cst_8 = arith.constant dense<0.000000e+00> : vector<8x58xf32>
    %9 = tpu.matmul %7, %8, %cst_8 {dimension_numbers = #tpu.dot_dimension_numbers<[1], [0], [0], [1], [0, 0, 1, 1], [], []>} : vector<8x86xf32>, vector<86x58xf32>, vector<8x58xf32> -> vector<8x58xf32>
    %c0_9 = arith.constant 0 : index
    %c0_10 = arith.constant 0 : index
    %10 = vector.load %arg6[%c0_9, %c0_10] : memref<1x58xf32, #tpu.memory_space<vmem>>, vector<1x58xf32>
    %11 = vector.broadcast %10 : vector<1x58xf32> to vector<8x58xf32>
    %12 = arith.addf %9, %11 : vector<8x58xf32>
    %cst_11 = arith.constant 0.000000e+00 : f32
    %13 = vector.broadcast %cst_11 : f32 to vector<8x58xf32>
    %14 = arith.maximumf %12, %13 : vector<8x58xf32>
    %c0_12 = arith.constant 0 : index
    %c0_13 = arith.constant 0 : index
    %15 = vector.load %arg7[%c0_12, %c0_13] : memref<58x38xf32, #tpu.memory_space<vmem>>, vector<58x38xf32>
    %cst_14 = arith.constant dense<0.000000e+00> : vector<8x38xf32>
    %16 = tpu.matmul %14, %15, %cst_14 {dimension_numbers = #tpu.dot_dimension_numbers<[1], [0], [0], [1], [0, 0, 1, 1], [], []>} : vector<8x58xf32>, vector<58x38xf32>, vector<8x38xf32> -> vector<8x38xf32>
    %c0_15 = arith.constant 0 : index
    %c0_16 = arith.constant 0 : index
    %17 = vector.load %arg8[%c0_15, %c0_16] : memref<1x38xf32, #tpu.memory_space<vmem>>, vector<1x38xf32>
    %18 = vector.broadcast %17 : vector<1x38xf32> to vector<8x38xf32>
    %19 = arith.addf %16, %18 : vector<8x38xf32>
    %cst_17 = arith.constant 0.000000e+00 : f32
    %20 = vector.broadcast %cst_17 : f32 to vector<8x38xf32>
    %21 = arith.maximumf %19, %20 : vector<8x38xf32>
    %c0_18 = arith.constant 0 : index
    %c0_19 = arith.constant 0 : index
    %22 = vector.load %arg9[%c0_18, %c0_19] : memref<38x58xf32, #tpu.memory_space<vmem>>, vector<38x58xf32>
    %cst_20 = arith.constant dense<0.000000e+00> : vector<8x58xf32>
    %23 = tpu.matmul %21, %22, %cst_20 {dimension_numbers = #tpu.dot_dimension_numbers<[1], [0], [0], [1], [0, 0, 1, 1], [], []>} : vector<8x38xf32>, vector<38x58xf32>, vector<8x58xf32> -> vector<8x58xf32>
    %c0_21 = arith.constant 0 : index
    %c0_22 = arith.constant 0 : index
    %24 = vector.load %arg10[%c0_21, %c0_22] : memref<1x58xf32, #tpu.memory_space<vmem>>, vector<1x58xf32>
    %25 = vector.broadcast %24 : vector<1x58xf32> to vector<8x58xf32>
    %26 = arith.addf %23, %25 : vector<8x58xf32>
    %27 = vector.extract_strided_slice %26 {offsets = [0, 0], sizes = [8, 29], strides = [1, 1]} : vector<8x58xf32> to vector<8x29xf32>
    %28 = vector.extract_strided_slice %26 {offsets = [0, 29], sizes = [8, 29], strides = [1, 1]} : vector<8x58xf32> to vector<8x29xf32>
    %29 = math.exp %28 : vector<8x29xf32>
    %c0_23 = arith.constant 0 : index
    %c0_24 = arith.constant 0 : index
    %30 = vector.load %arg2[%c0_23, %c0_24] : memref<8x29xf32, #tpu.memory_space<vmem>>, vector<8x29xf32>
    %31 = arith.mulf %29, %30 : vector<8x29xf32>
    %32 = arith.addf %27, %31 : vector<8x29xf32>
    %c0_25 = arith.constant 0 : index
    %c0_26 = arith.constant 0 : index
    %33 = vector.load %arg11[%c0_25, %c0_26] : memref<8x29xf32, #tpu.memory_space<vmem>>, vector<8x29xf32>
    tpu.vector_store %arg11[%c0_25, %c0_26], %32 {strides = array<i32>} : memref<8x29xf32, #tpu.memory_space<vmem>>, vector<8x29xf32>,
    %34 = arith.mulf %29, %29 : vector<8x29xf32>
    %35 = arith.mulf %27, %27 : vector<8x29xf32>
    %36 = arith.addf %34, %35 : vector<8x29xf32>
    %37 = arith.subf %36, %28 : vector<8x29xf32>
    %cst_27 = arith.constant 5.000000e-01 : f32
    %38 = vector.broadcast %cst_27 : f32 to vector<8x29xf32>
    %39 = arith.subf %37, %38 : vector<8x29xf32>
    %40 = vector.shape_cast %39 : vector<8x29xf32> to vector<1x8x29xf32>
    %cst_28 = arith.constant dense<0.000000e+00> : vector<1xf32>
    %41 = vector.multi_reduction <add>, %40, %cst_28 [1, 2] : vector<1x8x29xf32> to vector<1xf32>
    %42 = vector.shape_cast %41 : vector<1xf32> to vector<1x1x1xf32>
    %43 = vector.extract %42[0, 0, 0] : f32 from vector<1x1x1xf32>
    %44 = vector.broadcast %43 : f32 to vector<1x8x128xf32>
    %c0_29 = arith.constant 0 : index
    %c0_30 = arith.constant 0 : index
    %c0_31 = arith.constant 0 : index
    %45 = vector.load %arg12[%c0_29, %c0_30, %c0_31] : memref<1x8x128xf32, #tpu.memory_space<vmem>>, vector<1x8x128xf32>
    tpu.vector_store %arg12[%c0_29, %c0_30, %c0_31], %44 {strides = array<i32>} : memref<1x8x128xf32, #tpu.memory_space<vmem>>, vector<1x8x128xf32>,
    return
  }
  func.func @transform_0(%arg0: i32) -> (i32, i32) {
    %c0_i32 = arith.constant 0 : i32
    %c0_i32_0 = arith.constant 0 : i32
    return %arg0, %c0_i32 : i32, i32
  }
  func.func @transform_1(%arg0: i32) -> (i32, i32) {
    %c0_i32 = arith.constant 0 : i32
    %c0_i32_0 = arith.constant 0 : i32
    return %arg0, %c0_i32 : i32, i32
  }
  func.func @transform_2(%arg0: i32) -> (i32, i32) {
    %c0_i32 = arith.constant 0 : i32
    %c0_i32_0 = arith.constant 0 : i32
    %c0_i32_1 = arith.constant 0 : i32
    return %c0_i32, %c0_i32_0 : i32, i32
  }
  func.func @transform_3(%arg0: i32) -> (i32, i32) {
    %c0_i32 = arith.constant 0 : i32
    %c0_i32_0 = arith.constant 0 : i32
    %c0_i32_1 = arith.constant 0 : i32
    return %c0_i32, %c0_i32_0 : i32, i32
  }
  func.func @transform_4(%arg0: i32) -> (i32, i32) {
    %c0_i32 = arith.constant 0 : i32
    %c0_i32_0 = arith.constant 0 : i32
    %c0_i32_1 = arith.constant 0 : i32
    return %c0_i32, %c0_i32_0 : i32, i32
  }
  func.func @transform_5(%arg0: i32) -> (i32, i32) {
    %c0_i32 = arith.constant 0 : i32
    %c0_i32_0 = arith.constant 0 : i32
    %c0_i32_1 = arith.constant 0 : i32
    return %c0_i32, %c0_i32_0 : i32, i32
  }
  func.func @transform_6(%arg0: i32) -> (i32, i32) {
    %c0_i32 = arith.constant 0 : i32
    %c0_i32_0 = arith.constant 0 : i32
    %c0_i32_1 = arith.constant 0 : i32
    return %c0_i32, %c0_i32_0 : i32, i32
  }
  func.func @transform_7(%arg0: i32) -> (i32, i32) {
    %c0_i32 = arith.constant 0 : i32
    %c0_i32_0 = arith.constant 0 : i32
    %c0_i32_1 = arith.constant 0 : i32
    return %c0_i32, %c0_i32_0 : i32, i32
  }
  func.func @transform_8(%arg0: i32) -> (i32, i32) {
    %c0_i32 = arith.constant 0 : i32
    %c0_i32_0 = arith.constant 0 : i32
    %c0_i32_1 = arith.constant 0 : i32
    return %c0_i32, %c0_i32_0 : i32, i32
  }
  func.func @transform_9(%arg0: i32) -> (i32, i32) {
    %c0_i32 = arith.constant 0 : i32
    %c0_i32_0 = arith.constant 0 : i32
    %c0_i32_1 = arith.constant 0 : i32
    return %c0_i32, %c0_i32_0 : i32, i32
  }
  func.func @transform_10(%arg0: i32) -> (i32, i32) {
    %c0_i32 = arith.constant 0 : i32
    %c0_i32_0 = arith.constant 0 : i32
    return %arg0, %c0_i32 : i32, i32
  }
  func.func @transform_11(%arg0: i32) -> (i32, i32, i32) {
    %c0_i32 = arith.constant 0 : i32
    %c0_i32_0 = arith.constant 0 : i32
    %c0_i32_1 = arith.constant 0 : i32
    return %arg0, %c0_i32, %c0_i32_0 : i32, i32, i32
  }
}

</mosaic_0001>

<llo_original>
// kernel: tpu_custom_call.1
$region0: #{tpu_custom_call.1}
  #allocation0 [shape = 'u32[]', space=smem, size = 0x4, offset = 0x4, fixed_abs, tag = 'smem constant byte address 0x4 - core index']
  #allocation1 [shape = 'u32[144,128]{1,0:T(1,128)}', space=vmem, size = 0x12000, scoped, tag = 'internal scratch']
  %s0 = inlined_call_operand.vmem [shape: f32[8,115], index: 0, kind: input, shape index: {}]
  %s1 = inlined_call_operand.vmem [shape: f32[8,29], index: 1, kind: input, shape index: {}]
  %s2 = inlined_call_operand.vmem [shape: f32[115,86], index: 2, kind: input, shape index: {}]
  %s3 = inlined_call_operand.vmem [shape: f32[1,86], index: 3, kind: input, shape index: {}]
  %s4 = inlined_call_operand.vmem [shape: f32[86,58], index: 4, kind: input, shape index: {}]
  %s5 = inlined_call_operand.vmem [shape: f32[1,58], index: 5, kind: input, shape index: {}]
  %s6 = inlined_call_operand.vmem [shape: f32[58,38], index: 6, kind: input, shape index: {}]
  %s7 = inlined_call_operand.vmem [shape: f32[1,38], index: 7, kind: input, shape index: {}]
  %s8 = inlined_call_operand.vmem [shape: f32[38,58], index: 8, kind: input, shape index: {}]
  %s9 = inlined_call_operand.vmem [shape: f32[1,58], index: 9, kind: input, shape index: {}]
  %s10 = inlined_call_operand.hbm [shape: f32[8,29], index: 10, kind: output, shape index: {0}]
  %s11 = inlined_call_operand.hbm [shape: f32[1,8,128], index: 11, kind: output, shape index: {1}]
  %12 = xla_tuple %s10, %s11
  %s13 = sld [smem:[#allocation0]]
  $region58: #{tpu_custom_call.1} parent=0
    _
  %s15 = ssub.s32 1, %s13
  %s16 = scalar_select 0, %s15, %s13
  $region1: #{tpu_custom_call.1} parent=0
    #allocation2 [shape = 'u8[4096]{0}', space=vmem, size = 0x1000, scoped, tag = 'output window, operand 0, single buffered']
    #allocation3 [shape = 's32[1]{0}', space=sflag, size = 0x4, scoped, tag = 'scoped memory for tpu_custom_call.1']
    #allocation4 [shape = 'u8[4096]{0}', space=vmem, size = 0x1000, scoped, tag = 'output window, operand 1, single buffered']
    #allocation5 [shape = 's32[1]{0}', space=sflag, size = 0x4, scoped, tag = 'scoped memory for tpu_custom_call.1']
    %17 = vsyncpa [#allocation3], 0
    %18 = vsyncpa [#allocation5], 0
    // Predicated region
    $region2: #{tpu_custom_call.1} parent=1 // pred_check
      _
    $region3: #{tpu_custom_call.1} parent=1 // pred_check_branch
      %20 = sbr.rel (0) target = $region5
    $region4: #{tpu_custom_call.1} parent=1 // pred_region
      _
    $region5: #{tpu_custom_call.1} parent=1 // pred_fallthru
      _
    // Predicated region
    $region6: #{tpu_custom_call.1} parent=1 // pred_check
      _
    $region7: #{tpu_custom_call.1} parent=1 // pred_check_branch
      %22 = sbr.rel (0) target = $region9
    $region8: #{tpu_custom_call.1} parent=1 // pred_region
      _
    $region9: #{tpu_custom_call.1} parent=1 // pred_fallthru
      _
    // Predicated region
    $region10: #{tpu_custom_call.1} parent=1 // pred_check
      _
    $region11: #{tpu_custom_call.1} parent=1 // pred_check_branch
      %24 = sbr.rel (0) target = $region13
    $region12: #{tpu_custom_call.1} parent=1 // pred_region
      _
    $region13: #{tpu_custom_call.1} parent=1 // pred_fallthru
      _
    // Predicated region
    $region14: #{tpu_custom_call.1} parent=1 // pred_check
      _
    $region15: #{tpu_custom_call.1} parent=1 // pred_check_branch
      %26 = sbr.rel (0) target = $region17
    $region16: #{tpu_custom_call.1} parent=1 // pred_region
      _
    $region17: #{tpu_custom_call.1} parent=1 // pred_fallthru
      _
    // Predicated region
    $region18: #{tpu_custom_call.1} parent=1 // pred_check
      _
    $region19: #{tpu_custom_call.1} parent=1 // pred_check_branch
      %28 = sbr.rel (0) target = $region21
    $region20: #{tpu_custom_call.1} parent=1 // pred_region
      _
    $region21: #{tpu_custom_call.1} parent=1 // pred_fallthru
      _
    // Predicated region
    $region22: #{tpu_custom_call.1} parent=1 // pred_check
      _
    $region23: #{tpu_custom_call.1} parent=1 // pred_check_branch
      %30 = sbr.rel (0) target = $region25
    $region24: #{tpu_custom_call.1} parent=1 // pred_region
      _
    $region25: #{tpu_custom_call.1} parent=1 // pred_fallthru
      _
    // Predicated region
    $region26: #{tpu_custom_call.1} parent=1 // pred_check
      _
    $region27: #{tpu_custom_call.1} parent=1 // pred_check_branch
      %32 = sbr.rel (0) target = $region29
    $region28: #{tpu_custom_call.1} parent=1 // pred_region
      _
    $region29: #{tpu_custom_call.1} parent=1 // pred_fallthru
      _
    // Predicated region
    $region30: #{tpu_custom_call.1} parent=1 // pred_check
      _
    $region31: #{tpu_custom_call.1} parent=1 // pred_check_branch
      %34 = sbr.rel (0) target = $region33
    $region32: #{tpu_custom_call.1} parent=1 // pred_region
      _
    $region33: #{tpu_custom_call.1} parent=1 // pred_fallthru
      _
    // Predicated region
    $region34: #{tpu_custom_call.1} parent=1 // pred_check
      _
    $region35: #{tpu_custom_call.1} parent=1 // pred_check_branch
      %36 = sbr.rel (0) target = $region37
    $region36: #{tpu_custom_call.1} parent=1 // pred_region
      _
    $region37: #{tpu_custom_call.1} parent=1 // pred_fallthru
      _
    // Predicated region
    $region38: #{tpu_custom_call.1} parent=1 // pred_check
      _
    $region39: #{tpu_custom_call.1} parent=1 // pred_check_branch
      %38 = sbr.rel (0) target = $region41
    $region40: #{tpu_custom_call.1} parent=1 // pred_region
      _
    $region41: #{tpu_custom_call.1} parent=1 // pred_fallthru
      _
    %v39 = vld [vmem:[%s0] sm:$0xff]
    %v40 = vld [vmem:[%s2] sm:$0xff]
    %v41 = vld [vmem:[%s2 + $0x8] sm:$0xff]
    %v42 = vld [vmem:[%s2 + $0x10] sm:$0xff]
    %v43 = vld [vmem:[%s2 + $0x18] sm:$0xff]
    %v44 = vld [vmem:[%s2 + $0x20] sm:$0xff]
    %v45 = vld [vmem:[%s2 + $0x28] sm:$0xff]
    %v46 = vld [vmem:[%s2 + $0x30] sm:$0xff]
    %v47 = vld [vmem:[%s2 + $0x38] sm:$0xff]
    %v48 = vld [vmem:[%s2 + $0x40] sm:$0xff]
    %v49 = vld [vmem:[%s2 + $0x48] sm:$0xff]
    %v50 = vld [vmem:[%s2 + $0x50] sm:$0xff]
    %v51 = vld [vmem:[%s2 + $0x58] sm:$0xff]
    %v52 = vld [vmem:[%s2 + $0x60] sm:$0xff]
    %v53 = vld [vmem:[%s2 + $0x68] sm:$0xff]
    %v54 = vld [vmem:[%s2 + $0x70] sm:$0x7]
    %v55 = vld [vmem:[%s3] sm:$0x1]
    %v57 = vlaneseq
    %v58 = vshrl.u32 %v57, 7
    %v59 = vsub.s32 0, %v58
    %v60 = vrot.slane %v55, %v59
    %vm62 = vcmask 941056
    %v64 = vsel %vm62, %v39, 0
    %vm66 = vcmask 1042432
    %v68 = vsel %vm66, %v54, 0
    %70 = vmatprep.subr.mxu0 0.0
    %71 = vmatpush1.msra.mxu0 %v40
    %72 = vmatprep.subr.mxu0 0.0
    %73 = vmatpush1.msra.mxu0 %v41
    %74 = vmatprep.subr.mxu0 0.0
    %75 = vmatpush1.msra.mxu0 %v42
    %76 = vmatprep.subr.mxu0 0.0
    %77 = vmatpush1.msra.mxu0 %v43
    %78 = vmatprep.subr.mxu0 0.0
    %79 = vmatpush1.msra.mxu0 %v44
    %80 = vmatprep.subr.mxu0 0.0
    %81 = vmatpush1.msra.mxu0 %v45
    %82 = vmatprep.subr.mxu0 0.0
    %83 = vmatpush1.msra.mxu0 %v46
    %84 = vmatprep.subr.mxu0 0.0
    %85 = vmatpush1.msra.mxu0 %v47
    %86 = vmatprep.subr.mxu0 0.0
    %87 = vmatpush1.msra.mxu0 %v48
    %88 = vmatprep.subr.mxu0 0.0
    %89 = vmatpush1.msra.mxu0 %v49
    %90 = vmatprep.subr.mxu0 0.0
    %91 = vmatpush1.msra.mxu0 %v50
    %92 = vmatprep.subr.mxu0 0.0
    %93 = vmatpush1.msra.mxu0 %v51
    %94 = vmatprep.subr.mxu0 0.0
    %95 = vmatpush1.msra.mxu0 %v52
    %96 = vmatprep.subr.mxu0 0.0
    %97 = vmatpush1.msra.mxu0 %v53
    %98 = vmatprep.subr.mxu0 0.0
    %99 = vmatpush1.msra.mxu0 %v68
    %100 = vmatprep.subr.mxu0 0.0
    %101 = vmatpush1.msra.mxu0 0.0
    %102 = vmatprep.subr.mxu0 0.0
    %103 = vmatpush1.msra.mxu0 0.0
    %104 = vmatprep.subr.mxu0 0.0
    %105 = vmatpush1.msra.mxu0 0.0
    %106 = vmatprep.subr.mxu0 0.0
    %107 = vmatpush1.msra.mxu0 0.0
    %108 = vmatprep.subr.mxu0 0.0
    %109 = vmatpush1.msra.mxu0 0.0
    %110 = vmatprep.subr.mxu0 0.0
    %111 = vmatpush1.msra.mxu0 0.0
    %112 = vmatprep.subr.mxu0 0.0
    %113 = vmatpush1.msra.mxu0 0.0
    %114 = vmatprep.subr.mxu0 0.0
    %115 = vmatpush1.msra.mxu0 0.0
    %116 = vmatprep.subr.mxu0 0.0
    %117 = vmatpush1.msra.mxu0 0.0
    %118 = vmatprep.subr.mxu0 0.0
    %119 = vmatpush1.msra.mxu0 0.0
    %120 = vmatprep.subr.mxu0 0.0
    %121 = vmatpush1.msra.mxu0 0.0
    %122 = vmatprep.subr.mxu0 0.0
    %123 = vmatpush1.msra.mxu0 0.0
    %124 = vmatprep.subr.mxu0 0.0
    %125 = vmatpush1.msra.mxu0 0.0
    %126 = vmatprep.subr.mxu0 0.0
    %127 = vmatpush1.msra.mxu0 0.0
    %128 = vmatprep.subr.mxu0 0.0
    %129 = vmatpush1.msra.mxu0 0.0
    %130 = vmatprep.subr.mxu0 0.0
    %131 = vmatpush1.msra.mxu0 0.0
    %132 = vmatprep.subr.mxu0 0.0
    %133 = vmatpush1.msra.mxu0 0.0
    %134 = vmatprep.mubr.f32.mxu0 0.0
    %135 = vmatmul.mubr.f32.gmra.mrb[0].mxu0 %v64
    %v136 = vpop.f32.mrb[0].mxu0
    %v137 = vadd.f32 %v60, %v136
    %v138 = vpop.f32.mrb[0].mxu0
    %139 = vdwg.mxu0
    %v140 = vmax.f32 %v137, 0.0
    %v141 = vld [vmem:[%s4] sm:$0xff]
    %v142 = vld [vmem:[%s4 + $0x8] sm:$0xff]
    %v143 = vld [vmem:[%s4 + $0x10] sm:$0xff]
    %v144 = vld [vmem:[%s4 + $0x18] sm:$0xff]
    %v145 = vld [vmem:[%s4 + $0x20] sm:$0xff]
    %v146 = vld [vmem:[%s4 + $0x28] sm:$0xff]
    %v147 = vld [vmem:[%s4 + $0x30] sm:$0xff]
    %v148 = vld [vmem:[%s4 + $0x38] sm:$0xff]
    %v149 = vld [vmem:[%s4 + $0x40] sm:$0xff]
    %v150 = vld [vmem:[%s4 + $0x48] sm:$0xff]
    %v151 = vld [vmem:[%s4 + $0x50] sm:$0x3f]
    %v152 = vld [vmem:[%s5] sm:$0x1]
    %v154 = vlaneseq
    %v155 = vshrl.u32 %v154, 7
    %v156 = vsub.s32 0, %v155
    %v157 = vrot.slane %v152, %v156
    %vm159 = vcmask 703488
    %v161 = vsel %vm159, %v140, 0
    %vm163 = vcmask 1045504
    %v165 = vsel %vm163, %v151, 0
    %167 = vmatprep.subr.mxu0 0.0
    %168 = vmatpush1.msra.mxu0 %v141
    %169 = vmatprep.subr.mxu0 0.0
    %170 = vmatpush1.msra.mxu0 %v142
    %171 = vmatprep.subr.mxu0 0.0
    %172 = vmatpush1.msra.mxu0 %v143
    %173 = vmatprep.subr.mxu0 0.0
    %174 = vmatpush1.msra.mxu0 %v144
    %175 = vmatprep.subr.mxu0 0.0
    %176 = vmatpush1.msra.mxu0 %v145
    %177 = vmatprep.subr.mxu0 0.0
    %178 = vmatpush1.msra.mxu0 %v146
    %179 = vmatprep.subr.mxu0 0.0
    %180 = vmatpush1.msra.mxu0 %v147
    %181 = vmatprep.subr.mxu0 0.0
    %182 = vmatpush1.msra.mxu0 %v148
    %183 = vmatprep.subr.mxu0 0.0
    %184 = vmatpush1.msra.mxu0 %v149
    %185 = vmatprep.subr.mxu0 0.0
    %186 = vmatpush1.msra.mxu0 %v150
    %187 = vmatprep.subr.mxu0 0.0
    %188 = vmatpush1.msra.mxu0 %v165
    %189 = vmatprep.subr.mxu0 0.0
    %190 = vmatpush1.msra.mxu0 0.0
    %191 = vmatprep.subr.mxu0 0.0
    %192 = vmatpush1.msra.mxu0 0.0
    %193 = vmatprep.subr.mxu0 0.0
    %194 = vmatpush1.msra.mxu0 0.0
    %195 = vmatprep.subr.mxu0 0.0
    %196 = vmatpush1.msra.mxu0 0.0
    %197 = vmatprep.subr.mxu0 0.0
    %198 = vmatpush1.msra.mxu0 0.0
    %199 = vmatprep.subr.mxu0 0.0
    %200 = vmatpush1.msra.mxu0 0.0
    %201 = vmatprep.subr.mxu0 0.0
    %202 = vmatpush1.msra.mxu0 0.0
    %203 = vmatprep.subr.mxu0 0.0
    %204 = vmatpush1.msra.mxu0 0.0
    %205 = vmatprep.subr.mxu0 0.0
    %206 = vmatpush1.msra.mxu0 0.0
    %207 = vmatprep.subr.mxu0 0.0
    %208 = vmatpush1.msra.mxu0 0.0
    %209 = vmatprep.subr.mxu0 0.0
    %210 = vmatpush1.msra.mxu0 0.0
    %211 = vmatprep.subr.mxu0 0.0
    %212 = vmatpush1.msra.mxu0 0.0
    %213 = vmatprep.subr.mxu0 0.0
    %214 = vmatpush1.msra.mxu0 0.0
    %215 = vmatprep.subr.mxu0 0.0
    %216 = vmatpush1.msra.mxu0 0.0
    %217 = vmatprep.subr.mxu0 0.0
    %218 = vmatpush1.msra.mxu0 0.0
    %219 = vmatprep.subr.mxu0 0.0
    %220 = vmatpush1.msra.mxu0 0.0
    %221 = vmatprep.subr.mxu0 0.0
    %222 = vmatpush1.msra.mxu0 0.0
    %223 = vmatprep.subr.mxu0 0.0
    %224 = vmatpush1.msra.mxu0 0.0
    %225 = vmatprep.subr.mxu0 0.0
    %226 = vmatpush1.msra.mxu0 0.0
    %227 = vmatprep.subr.mxu0 0.0
    %228 = vmatpush1.msra.mxu0 0.0
    %229 = vmatprep.subr.mxu0 0.0
    %230 = vmatpush1.msra.mxu0 0.0
    %231 = vmatprep.mubr.f32.mxu0 0.0
    %232 = vmatmul.mubr.f32.gmra.mrb[0].mxu0 %v161
    %v233 = vpop.f32.mrb[0].mxu0
    %v234 = vadd.f32 %v157, %v233
    %v235 = vpop.f32.mrb[0].mxu0
    %236 = vdwg.mxu0
    %v237 = vmax.f32 %v234, 0.0
    %v238 = vld [vmem:[%s6] sm:$0xff]
    %v239 = vld [vmem:[%s6 + $0x8] sm:$0xff]
    %v240 = vld [vmem:[%s6 + $0x10] sm:$0xff]
    %v241 = vld [vmem:[%s6 + $0x18] sm:$0xff]
    %v242 = vld [vmem:[%s6 + $0x20] sm:$0xff]
    %v243 = vld [vmem:[%s6 + $0x28] sm:$0xff]
    %v244 = vld [vmem:[%s6 + $0x30] sm:$0xff]
    %v245 = vld [vmem:[%s6 + $0x38] sm:$0x3]
    %v246 = vld [vmem:[%s7] sm:$0x1]
    %v248 = vlaneseq
    %v249 = vshrl.u32 %v248, 7
    %v250 = vsub.s32 0, %v249
    %v251 = vrot.slane %v246, %v250
    %vm253 = vcmask 474112
    %v255 = vsel %vm253, %v237, 0
    %vm257 = vcmask 1041408
    %v259 = vsel %vm257, %v245, 0
    %261 = vmatprep.subr.mxu0 0.0
    %262 = vmatpush1.msra.mxu0 %v238
    %263 = vmatprep.subr.mxu0 0.0
    %264 = vmatpush1.msra.mxu0 %v239
    %265 = vmatprep.subr.mxu0 0.0
    %266 = vmatpush1.msra.mxu0 %v240
    %267 = vmatprep.subr.mxu0 0.0
    %268 = vmatpush1.msra.mxu0 %v241
    %269 = vmatprep.subr.mxu0 0.0
    %270 = vmatpush1.msra.mxu0 %v242
    %271 = vmatprep.subr.mxu0 0.0
    %272 = vmatpush1.msra.mxu0 %v243
    %273 = vmatprep.subr.mxu0 0.0
    %274 = vmatpush1.msra.mxu0 %v244
    %275 = vmatprep.subr.mxu0 0.0
    %276 = vmatpush1.msra.mxu0 %v259
    %277 = vmatprep.subr.mxu0 0.0
    %278 = vmatpush1.msra.mxu0 0.0
    %279 = vmatprep.subr.mxu0 0.0
    %280 = vmatpush1.msra.mxu0 0.0
    %281 = vmatprep.subr.mxu0 0.0
    %282 = vmatpush1.msra.mxu0 0.0
    %283 = vmatprep.subr.mxu0 0.0
    %284 = vmatpush1.msra.mxu0 0.0
    %285 = vmatprep.subr.mxu0 0.0
    %286 = vmatpush1.msra.mxu0 0.0
    %287 = vmatprep.subr.mxu0 0.0
    %288 = vmatpush1.msra.mxu0 0.0
    %289 = vmatprep.subr.mxu0 0.0
    %290 = vmatpush1.msra.mxu0 0.0
    %291 = vmatprep.subr.mxu0 0.0
    %292 = vmatpush1.msra.mxu0 0.0
    %293 = vmatprep.subr.mxu0 0.0
    %294 = vmatpush1.msra.mxu0 0.0
    %295 = vmatprep.subr.mxu0 0.0
    %296 = vmatpush1.msra.mxu0 0.0
    %297 = vmatprep.subr.mxu0 0.0
    %298 = vmatpush1.msra.mxu0 0.0
    %299 = vmatprep.subr.mxu0 0.0
    %300 = vmatpush1.msra.mxu0 0.0
    %301 = vmatprep.subr.mxu0 0.0
    %302 = vmatpush1.msra.mxu0 0.0
    %303 = vmatprep.subr.mxu0 0.0
    %304 = vmatpush1.msra.mxu0 0.0
    %305 = vmatprep.subr.mxu0 0.0
    %306 = vmatpush1.msra.mxu0 0.0
    %307 = vmatprep.subr.mxu0 0.0
    %308 = vmatpush1.msra.mxu0 0.0
    %309 = vmatprep.subr.mxu0 0.0
    %310 = vmatpush1.msra.mxu0 0.0
    %311 = vmatprep.subr.mxu0 0.0
    %312 = vmatpush1.msra.mxu0 0.0
    %313 = vmatprep.subr.mxu0 0.0
    %314 = vmatpush1.msra.mxu0 0.0
    %315 = vmatprep.subr.mxu0 0.0
    %316 = vmatpush1.msra.mxu0 0.0
    %317 = vmatprep.subr.mxu0 0.0
    %318 = vmatpush1.msra.mxu0 0.0
    %319 = vmatprep.subr.mxu0 0.0
    %320 = vmatpush1.msra.mxu0 0.0
    %321 = vmatprep.subr.mxu0 0.0
    %322 = vmatpush1.msra.mxu0 0.0
    %323 = vmatprep.subr.mxu0 0.0
    %324 = vmatpush1.msra.mxu0 0.0
    %325 = vmatprep.mubr.f32.mxu0 0.0
    %326 = vmatmul.mubr.f32.gmra.mrb[0].mxu0 %v255
    %v327 = vpop.f32.mrb[0].mxu0
    %v328 = vadd.f32 %v251, %v327
    %v329 = vpop.f32.mrb[0].mxu0
    %330 = vdwg.mxu0
    %v331 = vmax.f32 %v328, 0.0
    %v332 = vld [vmem:[%s8] sm:$0xff]
    %v333 = vld [vmem:[%s8 + $0x8] sm:$0xff]
    %v334 = vld [vmem:[%s8 + $0x10] sm:$0xff]
    %v335 = vld [vmem:[%s8 + $0x18] sm:$0xff]
    %v336 = vld [vmem:[%s8 + $0x20] sm:$0x3f]
    %v337 = vld [vmem:[%s9] sm:$0x1]
    %v339 = vlaneseq
    %v340 = vshrl.u32 %v339, 7
    %v341 = vsub.s32 0, %v340
    %v342 = vrot.slane %v337, %v341
    %vm344 = vcmask 310272
    %v346 = vsel %vm344, %v331, 0
    %v349 = vsel %vm163, %v336, 0
    %351 = vmatprep.subr.mxu0 0.0
    %352 = vmatpush1.msra.mxu0 %v332
    %353 = vmatprep.subr.mxu0 0.0
    %354 = vmatpush1.msra.mxu0 %v333
    %355 = vmatprep.subr.mxu0 0.0
    %356 = vmatpush1.msra.mxu0 %v334
    %357 = vmatprep.subr.mxu0 0.0
    %358 = vmatpush1.msra.mxu0 %v335
    %359 = vmatprep.subr.mxu0 0.0
    %360 = vmatpush1.msra.mxu0 %v349
    %361 = vmatprep.subr.mxu0 0.0
    %362 = vmatpush1.msra.mxu0 0.0
    %363 = vmatprep.subr.mxu0 0.0
    %364 = vmatpush1.msra.mxu0 0.0
    %365 = vmatprep.subr.mxu0 0.0
    %366 = vmatpush1.msra.mxu0 0.0
    %367 = vmatprep.subr.mxu0 0.0
    %368 = vmatpush1.msra.mxu0 0.0
    %369 = vmatprep.subr.mxu0 0.0
    %370 = vmatpush1.msra.mxu0 0.0
    %371 = vmatprep.subr.mxu0 0.0
    %372 = vmatpush1.msra.mxu0 0.0
    %373 = vmatprep.subr.mxu0 0.0
    %374 = vmatpush1.msra.mxu0 0.0
    %375 = vmatprep.subr.mxu0 0.0
    %376 = vmatpush1.msra.mxu0 0.0
    %377 = vmatprep.subr.mxu0 0.0
    %378 = vmatpush1.msra.mxu0 0.0
    %379 = vmatprep.subr.mxu0 0.0
    %380 = vmatpush1.msra.mxu0 0.0
    %381 = vmatprep.subr.mxu0 0.0
    %382 = vmatpush1.msra.mxu0 0.0
    %383 = vmatprep.subr.mxu0 0.0
    %384 = vmatpush1.msra.mxu0 0.0
    %385 = vmatprep.subr.mxu0 0.0
    %386 = vmatpush1.msra.mxu0 0.0
    %387 = vmatprep.subr.mxu0 0.0
    %388 = vmatpush1.msra.mxu0 0.0
    %389 = vmatprep.subr.mxu0 0.0
    %390 = vmatpush1.msra.mxu0 0.0
    %391 = vmatprep.subr.mxu0 0.0
    %392 = vmatpush1.msra.mxu0 0.0
    %393 = vmatprep.subr.mxu0 0.0
    %394 = vmatpush1.msra.mxu0 0.0
    %395 = vmatprep.subr.mxu0 0.0
    %396 = vmatpush1.msra.mxu0 0.0
    %397 = vmatprep.subr.mxu0 0.0
    %398 = vmatpush1.msra.mxu0 0.0
    %399 = vmatprep.subr.mxu0 0.0
    %400 = vmatpush1.msra.mxu0 0.0
    %401 = vmatprep.subr.mxu0 0.0
    %402 = vmatpush1.msra.mxu0 0.0
    %403 = vmatprep.subr.mxu0 0.0
    %404 = vmatpush1.msra.mxu0 0.0
    %405 = vmatprep.subr.mxu0 0.0
    %406 = vmatpush1.msra.mxu0 0.0
    %407 = vmatprep.subr.mxu0 0.0
    %408 = vmatpush1.msra.mxu0 0.0
    %409 = vmatprep.subr.mxu0 0.0
    %410 = vmatpush1.msra.mxu0 0.0
    %411 = vmatprep.subr.mxu0 0.0
    %412 = vmatpush1.msra.mxu0 0.0
    %413 = vmatprep.subr.mxu0 0.0
    %414 = vmatpush1.msra.mxu0 0.0
    %415 = vmatprep.mubr.f32.mxu0 0.0
    %416 = vmatmul.mubr.f32.gmra.mrb[0].mxu0 %v346
    %v417 = vpop.f32.mrb[0].mxu0
    %v418 = vadd.f32 %v342, %v417
    %v419 = vpop.f32.mrb[0].mxu0
    %420 = vdwg.mxu0
    %v421 = vmul.f32 %v418, 1.442695
    %v422 = vpow.pop %v421
    %v423 = vld [vmem:[%s1] sm:$0xff]
    %425 = vrot.lane.b32.xlu0 %v423, 29
    %v426 = vpop.permute.xlu0 %425
    %v428 = vmul.f32 %v422, %v426
    %430 = vrot.lane.b32.xlu0 %v428, 99
    %v431 = vpop.permute.xlu0 %430
    %v433 = vadd.f32 %v418, %v431
    %vm434 = vcmask 236544
    %435 = vst.msk [vmem:[#allocation2] sm:$0xff] %vm434, %v433
    %v436 = vmul.f32 %v422, %v422
    %v437 = vmul.f32 %v418, %v418
    %439 = vrot.lane.b32.xlu0 %v437, 29
    %v440 = vpop.permute.xlu0 %439
    %v442 = vadd.f32 %v436, %v440
    %v443 = vsub.f32 %v442, %v418
    %v444 = vsub.f32 %v443, 0.5
    %446 = vrot.lane.b32.xlu0 %v444, 99
    %v447 = vpop.permute.xlu0 %446
    %v449 = vsel %vm434, %v447, 0.0
    %450 = vadd.xlane.f32.xlu0 %v449
    %v451 = vpop.xlane.xlu0 %450
    %v452 = vrot.slane %v451, 4
    %v453 = vadd.f32 %v451, %v452
    %v454 = vrot.slane %v453, 2
    %v455 = vadd.f32 %v453, %v454
    %v456 = vrot.slane %v455, 1
    %v457 = vadd.f32 %v455, %v456
    %s458 = vtos %v457
    %v459 = vstv %s458
    %460 = vst [vmem:[#allocation4] sm:$0xff] %v459
    // Predicated region
    $region42: #{tpu_custom_call.1} parent=1 // pred_check
      _
    $region43: #{tpu_custom_call.1} parent=1 // pred_check_branch
      %462 = sbr.rel (0) target = $region45
    $region44: #{tpu_custom_call.1} parent=1 // pred_region
      %s464 = ssub.s32 128, 128
      %465 = vsyncadd [#allocation3], %s464
      %s467 = sshll.u32 [#allocation2], 4
      %s468 = int_to_ptr.vmem [resolvable:$true] %s467
      %470 = dma.vmem_to_hbm [thread:$0]  %s468, 128, %s10, [#allocation3]
    $region45: #{tpu_custom_call.1} parent=1 // pred_fallthru
      _
    // Predicated region
    $region46: #{tpu_custom_call.1} parent=1 // pred_check
      _
    $region47: #{tpu_custom_call.1} parent=1 // pred_check_branch
      %472 = sbr.rel (0) target = $region49
    $region48: #{tpu_custom_call.1} parent=1 // pred_region
      %s474 = ssub.s32 128, 128
      %475 = vsyncadd [#allocation5], %s474
      %s477 = sshll.u32 [#allocation4], 4
      %s478 = int_to_ptr.vmem [resolvable:$true] %s477
      %480 = dma.vmem_to_hbm [thread:$0]  %s478, 128, %s11, [#allocation5]
    $region49: #{tpu_custom_call.1} parent=1 // pred_fallthru
      _
    // Predicated region
    $region50: #{tpu_custom_call.1} parent=1 // pred_check
      _
    $region51: #{tpu_custom_call.1} parent=1 // pred_check_branch
      %482 = sbr.rel (0) target = $region53
    $region52: #{tpu_custom_call.1} parent=1 // pred_region
      %483 = dma.done [#allocation3], 128
    $region53: #{tpu_custom_call.1} parent=1 // pred_fallthru
      _
    // Predicated region
    $region54: #{tpu_custom_call.1} parent=1 // pred_check
      _
    $region55: #{tpu_custom_call.1} parent=1 // pred_check_branch
      %485 = sbr.rel (0) target = $region57
    $region56: #{tpu_custom_call.1} parent=1 // pred_region
      %486 = dma.done [#allocation5], 128
    $region57: #{tpu_custom_call.1} parent=1 // pred_fallthru
      _
    %487 = vsyncpa [#allocation3], 1
    %488 = vsyncpa [#allocation5], 1

</llo_original>
